<compile_context>
chip_gen: v5e
topology: v5e:2x2
jax: 0.10.0
libtpu: 0.0.40
codegen_flags: <defaults>
</compile_context>

<pallas_src>
import functools

import jax
import jax.numpy as jnp
from jax import lax
from jax.experimental import pallas as pl
from jax.experimental.pallas import tpu as pltpu


def _label_smoothing_kernel(x_ref, tgt_ref, out_ref, *, confidence, smoothing,
                            block_n, target_resident):
    """One (block_n, C) row tile: fused smoothed-NLL, one loss value per row.

    loss_row = logZ - (smoothing/C) * sum(x) - confidence * x[target]
    (equivalent to confidence*nll + smoothing*smooth_loss since the weights
    sum to 1).  Mean over N is done once in the wrapper.
    """
    x = x_ref[...].astype(jnp.float32)                      # (TB, C), f32 upcast
    tb, c = x.shape

    if target_resident:
        # Whole target lives in VMEM once; slice the rows for this step.
        start = pl.multiple_of(pl.program_id(0) * block_n, block_n)
        tgt = tgt_ref[pl.ds(start, block_n), :]             # (TB, 1) int32
    else:
        tgt = tgt_ref[...]                                  # (TB, 1) int32

    # log-softmax normalizer: logZ = m + log(sum(exp(x - m)))
    m = jnp.max(x, axis=-1, keepdims=True)                              # (TB, 1)
    lse = jnp.log(jnp.sum(jnp.exp(x - m), axis=-1, keepdims=True))      # (TB, 1)
    logz = m + lse

    # One-hot from a (1, C) iota broadcast (no (TB, C) int32 temporary).
    col_ids = lax.broadcasted_iota(jnp.int32, (1, c), dimension=1)
    onehot = col_ids == tgt                                             # (TB, C)

    sum_x = jnp.sum(x, axis=-1, keepdims=True)                          # (TB, 1)
    x_tgt = jnp.sum(jnp.where(onehot, x, 0.0), axis=-1, keepdims=True)  # (TB, 1)

    w_uniform = jnp.float32(smoothing / c)
    out_ref[...] = logz - w_uniform * sum_x - jnp.float32(confidence) * x_tgt


def _pick_block_n(n, c, itemsize):
    """Row-tile size: ~2 MiB x tiles, >= ~8 grid steps, dtype-aligned sublanes."""
    # Sublane packing: 8 rows for 4-byte, 16 for 2-byte, 32 for 1-byte dtypes.
    align = max(8, 32 // max(1, itemsize))
    bytes_per_row = max(1, c * itemsize)

    # ~2 MiB per x tile hits the pipelined sweet spot; hard cap at 8 MiB per
    # buffer so the double-buffered x plus ~4x block_n*C*4 of f32 temporaries
    # still leaves headroom inside v7x's 64 MiB VMEM.
    target_rows = (2 << 20) // bytes_per_row
    cap_rows = (8 << 20) // bytes_per_row
    rows = min(target_rows, cap_rows)

    # Keep the grid at >= ~8 steps so the BlockSpec pipeline can overlap HBM
    # DMA with compute (a 1-2 step grid degenerates to serial DMA + compute).
    rows_for_steps = pl.cdiv(n, 8)
    rows_for_steps = ((rows_for_steps + align - 1) // align) * align
    rows = min(rows, rows_for_steps)

    rows = (rows // align) * align
    return int(max(align, rows))


def label_smoothing_loss(x, target, smoothing=0.1, block_n=None):
    """x: (N, C) float logits; target: (N,) int class ids. Returns scalar f32 loss."""
    n, c = x.shape
    confidence = 1.0 - smoothing
    itemsize = jnp.dtype(x.dtype).itemsize

    if block_n is None:
        block_n = _pick_block_n(n, c, itemsize)
    assert block_n % 8 == 0, "block_n must be a multiple of 8"

    # Pad ragged batches up to a block_n multiple; padded rows are excluded
    # from the final static slice, so no in-kernel masking is needed.
    n_pad = int(pl.cdiv(n, block_n)) * block_n
    if n_pad != n:
        x = jnp.pad(x, ((0, n_pad - n), (0, 0)))
        target = jnp.pad(target, (0, n_pad - n))
    tgt2d = target.astype(jnp.int32).reshape(n_pad, 1)
    n_blocks = n_pad // block_n

    # Keep the whole target resident in VMEM unless it is unreasonably large.
    target_resident = (n_pad * 4) <= (4 << 20)
    if target_resident:
        tgt_spec = pl.BlockSpec((n_pad, 1), lambda i: (0, 0))
        tgt_vmem = 2 * n_pad * 4
    else:
        tgt_spec = pl.BlockSpec((block_n, 1), lambda i: (i, 0))
        tgt_vmem = 2 * block_n * 4

    # Realistic VMEM estimate: double-buffered x tile + ~4 full-block f32
    # temporaries (upcast, exp, select, one-hot) + target + output + margin.
    x_tile_bytes = block_n * c * itemsize
    f32_tile_bytes = block_n * c * 4
    needed = 2 * x_tile_bytes + 4 * f32_tile_bytes + tgt_vmem \
        + 4 * block_n * 4 + (4 << 20)
    vmem_limit = int(min(max(needed, 16 << 20), 48 << 20))

    kernel = functools.partial(
        _label_smoothing_kernel,
        confidence=confidence,
        smoothing=smoothing,
        block_n=block_n,
        target_resident=target_resident,
    )

    per_row = pl.pallas_call(
        kernel,
        out_shape=jax.ShapeDtypeStruct((n_pad, 1), jnp.float32),
        grid_spec=pltpu.PrefetchScalarGridSpec(
            num_scalar_prefetch=0,
            grid=(n_blocks,),
            in_specs=[
                pl.BlockSpec((block_n, c), lambda i: (i, 0)),
                tgt_spec,
            ],
            out_specs=pl.BlockSpec((block_n, 1), lambda i: (i, 0)),
        ),
        compiler_params=pltpu.CompilerParams(
            dimension_semantics=("parallel",),
            vmem_limit_bytes=vmem_limit,
        ),
    )(x, tgt2d)

    # Final cross-sublane reduction + mean, paid exactly once (padded rows
    # excluded by the static slice).
    return jnp.sum(per_row[:n, 0]) / jnp.float32(n)


def _reference(x, target, smoothing):
    confidence = 1.0 - smoothing
    logprobs = jax.nn.log_softmax(x.astype(jnp.float32), axis=-1)
    nll_loss = -jnp.take_along_axis(logprobs, target[:, None], axis=-1)[:, 0]
    smooth_loss = -jnp.mean(logprobs, axis=-1)
    loss = confidence * nll_loss + smoothing * smooth_loss
    return jnp.mean(loss)


if __name__ == "__main__":
    key = jax.random.PRNGKey(0)
    kx, kt = jax.random.split(key)
    smoothing = 0.1

    # Small case (auto tiling; grid still gets >= 2 steps).
    N, C = 16, 32
    x = jax.random.normal(kx, (N, C), dtype=jnp.float32)
    target = jax.random.randint(kt, (N,), 0, C, dtype=jnp.int32)
    loss = jax.block_until_ready(label_smoothing_loss(x, target, smoothing=smoothing))
    ref = _reference(x, target, smoothing)
    assert jnp.allclose(loss, ref, atol=1e-5, rtol=1e-5), (loss, ref)

    # Ragged batch: N not a multiple of the tile -> padded + sliced out.
    N2, C2 = 50, 96
    x2 = jax.random.normal(kx, (N2, C2), dtype=jnp.float32)
    target2 = jax.random.randint(kt, (N2,), 0, C2, dtype=jnp.int32)
    loss2 = jax.block_until_ready(label_smoothing_loss(x2, target2, smoothing=smoothing))
    ref2 = _reference(x2, target2, smoothing)
    assert jnp.allclose(loss2, ref2, atol=1e-5, rtol=1e-5), (loss2, ref2)

    # bf16 logits, explicit 16-aligned tile: exercises upcast + multi-block grid.
    N3, C3 = 64, 256
    x3 = jax.random.normal(kx, (N3, C3), dtype=jnp.float32).astype(jnp.bfloat16)
    target3 = jax.random.randint(kt, (N3,), 0, C3, dtype=jnp.int32)
    loss3 = jax.block_until_ready(
        label_smoothing_loss(x3, target3, smoothing=smoothing, block_n=16))
    ref3 = _reference(x3, target3, smoothing)
    assert jnp.allclose(loss3, ref3, atol=2e-5, rtol=1e-5), (loss3, ref3)

    print("KERNEL_OK")
</pallas_src>

<mosaic_0001>
module attributes {stable_mosaic.version = 11 : i64} {
  func.func @_label_smoothing_kernel(%arg0: i32, %arg1: memref<8x32xf32, #tpu.memory_space<vmem>>, %arg2: memref<16x1xi32, #tpu.memory_space<vmem>>, %arg3: memref<8x1xf32, #tpu.memory_space<vmem>>) attributes {dimension_semantics = [#tpu.dimension_semantics<parallel>], iteration_bounds = array<i64: 2>, scalar_prefetch = 0 : i64, scratch_operands = 0 : i64, tpu.core_type = #tpu.core_type<tc>, window_params = [{transform_indices = @transform_0, window_bounds = array<i64: 8, 32>}, {pipeline_mode = #tpu.pipeline_mode<synchronous>, transform_indices = @transform_1, window_bounds = array<i64: 16, 1>}, {transform_indices = @transform_2, window_bounds = array<i64: 8, 1>}]} {
    %c0 = arith.constant 0 : index
    %c0_0 = arith.constant 0 : index
    %0 = vector.load %arg1[%c0, %c0_0] : memref<8x32xf32, #tpu.memory_space<vmem>>, vector<8x32xf32>
    %c8_i32 = arith.constant 8 : i32
    %1 = arith.muli %arg0, %c8_i32 : i32
    %2 = tpu.assume_multiple %1, 8 : i32
    %3 = arith.index_cast %2 : i32 to index
    %c0_1 = arith.constant 0 : index
    %4 = vector.load %arg2[%3, %c0_1] : memref<16x1xi32, #tpu.memory_space<vmem>>, vector<8x1xi32>
    %cst = arith.constant dense<0xFF800000> : vector<8xf32>
    %5 = vector.multi_reduction <maximumf>, %0, %cst [1] : vector<8x32xf32> to vector<8xf32>
    %6 = vector.shape_cast %5 : vector<8xf32> to vector<8x1xf32>
    %7 = vector.broadcast %6 : vector<8x1xf32> to vector<8x32xf32>
    %8 = arith.subf %0, %7 : vector<8x32xf32>
    %9 = math.exp %8 : vector<8x32xf32>
    %cst_2 = arith.constant dense<0.000000e+00> : vector<8xf32>
    %10 = vector.multi_reduction <add>, %9, %cst_2 [1] : vector<8x32xf32> to vector<8xf32>
    %11 = vector.shape_cast %10 : vector<8xf32> to vector<8x1xf32>
    %12 = math.log %11 : vector<8x1xf32>
    %13 = arith.addf %6, %12 : vector<8x1xf32>
    %14 = tpu.iota {dimensions = array<i32: 1>} : vector<1x32xi32>
    %15 = vector.broadcast %14 : vector<1x32xi32> to vector<8x32xi32>
    %16 = vector.broadcast %4 : vector<8x1xi32> to vector<8x32xi32>
    %17 = arith.cmpi eq, %15, %16 : vector<8x32xi32>
    %cst_3 = arith.constant dense<0.000000e+00> : vector<8xf32>
    %18 = vector.multi_reduction <add>, %0, %cst_3 [1] : vector<8x32xf32> to vector<8xf32>
    %19 = vector.shape_cast %18 : vector<8xf32> to vector<8x1xf32>
    %cst_4 = arith.constant 0.000000e+00 : f32
    %20 = vector.broadcast %cst_4 : f32 to vector<8x32xf32>
    %21 = arith.select %17, %0, %20 : vector<8x32xi1>, vector<8x32xf32>
    %cst_5 = arith.constant dense<0.000000e+00> : vector<8xf32>
    %22 = vector.multi_reduction <add>, %21, %cst_5 [1] : vector<8x32xf32> to vector<8xf32>
    %23 = vector.shape_cast %22 : vector<8xf32> to vector<8x1xf32>
    %cst_6 = arith.constant 3.125000e-03 : f32
    %24 = vector.broadcast %cst_6 : f32 to vector<8x1xf32>
    %25 = arith.mulf %24, %19 : vector<8x1xf32>
    %26 = arith.subf %13, %25 : vector<8x1xf32>
    %cst_7 = arith.constant 0.899999976 : f32
    %27 = vector.broadcast %cst_7 : f32 to vector<8x1xf32>
    %28 = arith.mulf %27, %23 : vector<8x1xf32>
    %29 = arith.subf %26, %28 : vector<8x1xf32>
    %c0_8 = arith.constant 0 : index
    %c0_9 = arith.constant 0 : index
    %30 = vector.load %arg3[%c0_8, %c0_9] : memref<8x1xf32, #tpu.memory_space<vmem>>, vector<8x1xf32>
    tpu.vector_store %arg3[%c0_8, %c0_9], %29 {strides = array<i32>} : memref<8x1xf32, #tpu.memory_space<vmem>>, vector<8x1xf32>,
    return
  }
  func.func @transform_0(%arg0: i32) -> (i32, i32) {
    %c0_i32 = arith.constant 0 : i32
    %c0_i32_0 = arith.constant 0 : i32
    return %arg0, %c0_i32 : i32, i32
  }
  func.func @transform_1(%arg0: i32) -> (i32, i32) {
    %c0_i32 = arith.constant 0 : i32
    %c0_i32_0 = arith.constant 0 : i32
    %c0_i32_1 = arith.constant 0 : i32
    return %c0_i32, %c0_i32_0 : i32, i32
  }
  func.func @transform_2(%arg0: i32) -> (i32, i32) {
    %c0_i32 = arith.constant 0 : i32
    %c0_i32_0 = arith.constant 0 : i32
    return %arg0, %c0_i32 : i32, i32
  }
}

</mosaic_0001>

<llo_original>
// kernel: tpu_custom_call.1
$region0: #{tpu_custom_call.1}
  #allocation0 [shape = 'u32[]', space=smem, size = 0x4, offset = 0x4, fixed_abs, tag = 'smem constant byte address 0x4 - core index']
  #allocation1 [shape = 'u32[72,128]{1,0:T(1,128)}', space=vmem, size = 0x9000, scoped, tag = 'internal scratch']
  %s0 = inlined_call_operand.vmem [shape: f32[16,32], index: 0, kind: input, shape index: {}]
  %s1 = inlined_call_operand.vmem [shape: s32[16,1], index: 1, kind: input, shape index: {}]
  %s2 = inlined_call_operand.vmem [shape: f32[16,1], index: 2, kind: output, shape index: {}]
  %s3 = sld [smem:[#allocation0]]
  $region41: #{tpu_custom_call.1} parent=0
    _
  %s5 = ssub.s32 1, %s3
  %s6 = scalar_select 0, %s5, %s3
  loop: start=0, step=1, limit=4
  $region2: #{tpu_custom_call.1} parent=0 // loop_pre_header
    _
  $region3: #{tpu_custom_call.1} parent=0 // loop_header
    %s8 = sphi 0, %s12
    %p9 = scmp.ge.s32.totalorder %s8, 4
    %s18 = sphi 0, %s20
    %s21 = sphi 0, %s18
    %s22 = sphi 0, %s21
    %s38 = sphi 0, %s22
    %s42 = sphi 0, %s42
    %s44 = sphi 0, %s42
    %s45 = sphi 0, %s44
    %s59 = sphi 0, %s45
    %s65 = sphi 0, %s67
    %s68 = sphi 0, %s65
    %s69 = sphi 0, %s68
    %s85 = sphi 0, %s69
  $region4: #{tpu_custom_call.1} parent=0 // loop_header_branch
    %11 = sbr.rel (%p9) target = $region8
  $region5: #{tpu_custom_call.1} parent=0 // loop_body
    %s13 = ssub.s32 %s8, 1
    %s14 = ssub.s32 %s8, 2
    %s15 = sadd.s32 %s8, 1
    %s16 = ssub.s32 %s8, %s15
    %p17 = scmp.eq.s32.totalorder %s16, 0
    %s19 = sadd.s32 %s18, 1
    %s20 = scalar_select %p17, %s18, %s19
    %p23 = pneg %p17
    %p24 = scmp.eq.s32.totalorder %s8, 1
    %p25 = por %p23, %p24
    %p26 = scmp.ne.s32.totalorder %s18, %s21
    %p27 = scmp.eq.s32.totalorder %s8, 0
    %p28 = por %p26, %p27
    %p29 = scmp.ne.s32.totalorder %s18, %s21
    %p30 = scmp.eq.s32.totalorder %s13, 1
    %p31 = por %p29, %p30
    %p32 = scmp.ne.s32.totalorder %s21, %s22
    %p33 = scmp.eq.s32.totalorder %s13, 0
    %p34 = por %p32, %p33
    %p35 = scmp.ne.s32.totalorder %s21, %s22
    %p36 = scmp.eq.s32.totalorder %s14, 1
    %p37 = por %p35, %p36
    %p39 = scmp.ne.s32.totalorder %s22, %s38
    %p40 = scmp.eq.s32.totalorder %s14, 0
    %p41 = por %p39, %p40
    %s43 = sadd.s32 %s42, 1
    %p46 = scmp.eq.s32.totalorder %s8, 1
    %p47 = scmp.ne.s32.totalorder %s42, %s44
    %p48 = scmp.eq.s32.totalorder %s8, 0
    %p49 = por %p47, %p48
    %p50 = scmp.ne.s32.totalorder %s42, %s44
    %p51 = scmp.eq.s32.totalorder %s13, 1
    %p52 = por %p50, %p51
    %p53 = scmp.ne.s32.totalorder %s44, %s45
    %p54 = scmp.eq.s32.totalorder %s13, 0
    %p55 = por %p53, %p54
    %p56 = scmp.ne.s32.totalorder %s44, %s45
    %p57 = scmp.eq.s32.totalorder %s14, 1
    %p58 = por %p56, %p57
    %p60 = scmp.ne.s32.totalorder %s45, %s59
    %p61 = scmp.eq.s32.totalorder %s14, 0
    %p62 = por %p60, %p61
    %s63 = ssub.s32 %s8, %s15
    %p64 = scmp.eq.s32.totalorder %s63, 0
    %s66 = sadd.s32 %s65, 1
    %s67 = scalar_select %p64, %s65, %s66
    %p70 = pneg %p64
    %p71 = scmp.eq.s32.totalorder %s8, 1
    %p72 = por %p70, %p71
    %p73 = scmp.ne.s32.totalorder %s65, %s68
    %p74 = scmp.eq.s32.totalorder %s8, 0
    %p75 = por %p73, %p74
    %p76 = scmp.ne.s32.totalorder %s65, %s68
    %p77 = scmp.eq.s32.totalorder %s13, 1
    %p78 = por %p76, %p77
    %p79 = scmp.ne.s32.totalorder %s68, %s69
    %p80 = scmp.eq.s32.totalorder %s13, 0
    %p81 = por %p79, %p80
    %p82 = scmp.ne.s32.totalorder %s68, %s69
    %p83 = scmp.eq.s32.totalorder %s14, 1
    %p84 = por %p82, %p83
    %p86 = scmp.ne.s32.totalorder %s69, %s85
    %p87 = scmp.eq.s32.totalorder %s14, 0
    %p88 = por %p86, %p87
    %p89 = scmp.le.s32.totalorder 1, %s8
    %p90 = scmp.lt.s32.totalorder %s8, 3
    %p91 = pnand %p89, %p90
    %p92 = pneg %p91
    // Predicated region
    $region9: #{tpu_custom_call.1} parent=5 // pred_check
      _
    $region10: #{tpu_custom_call.1} parent=5 // pred_check_branch
      %94 = sbr.rel (%p91) target = $region12
    $region11: #{tpu_custom_call.1} parent=5 // pred_region
      %s95 = ssub.s32 %s8, 1
      // Predicated region
      $region13: #{tpu_custom_call.1} parent=11 // pred_check
        %p96 = pneg %p55
      $region14: #{tpu_custom_call.1} parent=11 // pred_check_branch
        %98 = sbr.rel (%p96) target = $region16
      $region15: #{tpu_custom_call.1} parent=11 // pred_region
        _
      $region16: #{tpu_custom_call.1} parent=11 // pred_fallthru
        _
    $region12: #{tpu_custom_call.1} parent=5 // pred_fallthru
      _
    %p99 = scmp.lt.s32.totalorder %s8, 2
    // Predicated region
    $region17: #{tpu_custom_call.1} parent=5 // pred_check
      %p100 = pneg %p99
    $region18: #{tpu_custom_call.1} parent=5 // pred_check_branch
      %102 = sbr.rel (%p100) target = $region20
    $region19: #{tpu_custom_call.1} parent=5 // pred_region
      // Predicated region
      $region21: #{tpu_custom_call.1} parent=19 // pred_check
        %p103 = pneg %p28
      $region22: #{tpu_custom_call.1} parent=19 // pred_check_branch
        %105 = sbr.rel (%p103) target = $region24
      $region23: #{tpu_custom_call.1} parent=19 // pred_region
        %p106 = scmp.lt.s32.totalorder %s8, 1
        %s107 = scalar_select %p106, %s8, 1
        %s108 = smul.addr %s107, 8
        %s109 = scalar_lea.vmem %s0, %s108
      $region24: #{tpu_custom_call.1} parent=19 // pred_fallthru
        _
    $region20: #{tpu_custom_call.1} parent=5 // pred_fallthru
      _
    %p110 = scmp.le.s32.totalorder 1, %s8
    %p111 = scmp.lt.s32.totalorder %s8, 3
    %p112 = pnand %p110, %p111
    %p113 = pneg %p112
    // Predicated region
    $region25: #{tpu_custom_call.1} parent=5 // pred_check
      _
    $region26: #{tpu_custom_call.1} parent=5 // pred_check_branch
      %115 = sbr.rel (%p112) target = $region28
    $region27: #{tpu_custom_call.1} parent=5 // pred_region
      %s116 = ssub.s32 %s8, 1
      %p117 = scmp.lt.s32.totalorder %s13, 1
      %s118 = scalar_select %p117, %s13, 1
      %s119 = smul.addr %s118, 8
      %s120 = scalar_lea.vmem %s0, %s119
      %p121 = pneg %p34
      %p122 = pneg %p31
      %p123 = pneg %p55
      %p124 = pneg %p52
      %p125 = pneg %p81
      %p126 = pneg %p78
      %p127 = scmp.lt.s32.totalorder %s13, 1
      %s128 = scalar_select %p127, %s13, 1
      %s129 = smul.addr %s128, 8
      %s130 = scalar_lea.vmem %s2, %s129
      %p131 = scmp.lt.s32.totalorder %s13, 1
      %s132 = scalar_select %p131, %s13, 1
      %s133 = smul.addr %s132, 8
      %s134 = scalar_lea.vmem %s0, %s133
      %p135 = scmp.lt.s32.totalorder %s13, 1
      %s136 = scalar_select %p135, %s13, 1
      %s137 = smul.addr %s136, 8
      %s138 = scalar_lea.vmem %s2, %s137
      %v139 = vld [vmem:[%s134] sm:$0xff]
      %s140 = smul.u32 %s13, 8
      %s141 = scalar_lea.vmem %s1, %s140
      %v142 = vld [vmem:[%s141] sm:$0xff]
      %vm143 = vcmask 261120
      %v144 = vsel %vm143, %v139, -inf
      %145 = vmax.xlane.f32.xlu0 %v144
      %v146 = vpop.xlane.xlu0 %145
      %v147 = vsub.f32 %v139, %v146
      %v148 = vmul.f32 %v147, 1.442695
      %v149 = vpow.pop %v148
      %v150 = vsel %vm143, %v149, 0.0
      %151 = vadd.xlane.f32.xlu0 %v150
      %v152 = vpop.xlane.xlu0 %151
      %v153 = vlog2.pop %v152
      %v154 = vmul.f32 %v153, 0.6931472
      %v155 = vadd.f32 %v146, %v154
      %v156 = vlaneseq
      %v157 = vand.u32 %v156, 127
      %158 = vset.pattern.permute.xlu0 0
      %159 = vperm.xlu0 %158, %v142
      %v160 = vpop.permute.xlu0 %159
      %vm161 = vcmp.eq.s32.totalorder %v157, %v160
      %v162 = vsel %vm143, %v139, 0.0
      %163 = vadd.xlane.f32.xlu0 %v162
      %v164 = vpop.xlane.xlu0 %163
      %v165 = vsel %vm161, %v139, 0.0
      %v166 = vsel %vm143, %v165, 0.0
      %167 = vadd.xlane.f32.xlu0 %v166
      %v168 = vpop.xlane.xlu0 %167
      %v169 = vmul.f32 %v164, 0.003125
      %v170 = vsub.f32 %v155, %v169
      %v171 = vmul.f32 %v168, 0.9
      %v172 = vsub.f32 %v170, %v171
      %vm173 = vcmask 7168
      %174 = vst.msk [vmem:[%s138] sm:$0xff] %vm173, %v172
      %p175 = scmp.lt.s32.totalorder %s13, 1
      %s176 = scalar_select %p175, %s13, 1
      %s177 = smul.addr %s176, 8
      %s178 = scalar_lea.vmem %s2, %s177
      // Predicated region
      $region29: #{tpu_custom_call.1} parent=27 // pred_check
        %p179 = pneg %p78
      $region30: #{tpu_custom_call.1} parent=27 // pred_check_branch
        %181 = sbr.rel (%p179) target = $region32
      $region31: #{tpu_custom_call.1} parent=27 // pred_region
        _
      $region32: #{tpu_custom_call.1} parent=27 // pred_fallthru
        _
    $region28: #{tpu_custom_call.1} parent=5 // pred_fallthru
      _
    %p182 = scmp.le.s32.totalorder 2, %s8
    // Predicated region
    $region33: #{tpu_custom_call.1} parent=5 // pred_check
      %p183 = pneg %p182
    $region34: #{tpu_custom_call.1} parent=5 // pred_check_branch
      %185 = sbr.rel (%p183) target = $region36
    $region35: #{tpu_custom_call.1} parent=5 // pred_region
      %s186 = ssub.s32 %s8, 2
      // Predicated region
      $region37: #{tpu_custom_call.1} parent=35 // pred_check
        %p187 = pneg %p84
      $region38: #{tpu_custom_call.1} parent=35 // pred_check_branch
        %189 = sbr.rel (%p187) target = $region40
      $region39: #{tpu_custom_call.1} parent=35 // pred_region
        %p190 = scmp.lt.s32.totalorder %s14, 1
        %s191 = scalar_select %p190, %s14, 1
        %s192 = smul.addr %s191, 8
        %s193 = scalar_lea.vmem %s2, %s192
      $region40: #{tpu_custom_call.1} parent=35 // pred_fallthru
        _
    $region36: #{tpu_custom_call.1} parent=5 // pred_fallthru
      _
  $region6: #{tpu_custom_call.1} parent=0 // loop_footer
    %s12 = sadd.s32 1, %s8
  $region7: #{tpu_custom_call.1} parent=0 // loop_footer_branch
    %7 = sbr.rel target = $region3
  $region8: #{tpu_custom_call.1} parent=0 // loop_exit
    _

</llo_original>
